<compile_context>
chip_gen: v5e
topology: v5e:2x2
jax: 0.10.0
libtpu: 0.0.40
codegen_flags: <defaults>
</compile_context>

<pallas_src>
import functools

import jax
import jax.numpy as jnp
from jax.experimental import pallas as pl
from jax.experimental.pallas import tpu as pltpu

LANES = 128          # lane width (last dim of the slab)
SUBLANES = 8         # minimum row granularity for (8, 128) tiling
MAX_TILE_R = 2048    # rows per block: 2048*128*4B = 1 MiB per f32 block


def _leaky_relu_kernel(x_ref, o_ref, *, slope):
    x = x_ref[...]
    # max(slope * x, x)  ==  x for x >= 0, slope * x for x < 0  (slope in (0,1))
    o_ref[...] = jnp.maximum(x * slope, x)


def leaky_relu(x, negative_slope=0.1):
    """Elementwise LeakyReLU: max(negative_slope * x, x). Same shape/dtype as x."""
    orig_shape = x.shape
    orig_dtype = x.dtype
    n = x.size

    # Flatten to a lane-dense [rows, 128] slab (rows a multiple of 8).
    flat = x.reshape(-1)
    base = SUBLANES * LANES
    pad = (-n) % base
    if pad:
        flat = jnp.pad(flat, (0, pad))
    rows = flat.shape[0] // LANES

    # Pick the largest row tile that fits; pad rows so the grid divides evenly.
    if rows <= MAX_TILE_R:
        tile_r = rows
    else:
        tile_r = MAX_TILE_R
        pad_rows = (-rows) % tile_r
        if pad_rows:
            flat = jnp.pad(flat, (0, pad_rows * LANES))
            rows += pad_rows

    slab = flat.reshape(rows, LANES)
    grid = (rows // tile_r,)

    kernel = functools.partial(_leaky_relu_kernel, slope=float(negative_slope))

    out = pl.pallas_call(
        kernel,
        out_shape=jax.ShapeDtypeStruct((rows, LANES), orig_dtype),
        grid=grid,
        in_specs=[pl.BlockSpec((tile_r, LANES), lambda i: (i, 0))],
        out_specs=pl.BlockSpec((tile_r, LANES), lambda i: (i, 0)),
        compiler_params=pltpu.CompilerParams(
            # Elementwise: every grid step is independent -> megacore-shardable.
            dimension_semantics=("parallel",),
        ),
    )(slab)

    return out.reshape(-1)[:n].reshape(orig_shape)


if __name__ == "__main__":
    key = jax.random.PRNGKey(0)
    k1, k2 = jax.random.split(key)

    # Small NCHW input consistent with the framework's usage.
    x = jax.random.normal(k1, (2, 4, 16, 16), dtype=jnp.float32)
    y = leaky_relu(x)
    jax.block_until_ready(y)

    ref = jnp.maximum(0.1 * x, x)
    assert y.shape == x.shape and y.dtype == x.dtype
    assert jnp.allclose(y, ref, rtol=1e-6, atol=1e-6), "f32 mismatch"

    # Second small case: odd element count (exercises the pad path) + bf16
    # native-dtype handling (no wrapper-side f32 copies).
    xb = jax.random.normal(k2, (3, 5, 7, 11), dtype=jnp.bfloat16)
    yb = leaky_relu(xb)
    jax.block_until_ready(yb)
    refb = jnp.maximum(jnp.bfloat16(0.1) * xb, xb)
    assert yb.shape == xb.shape and yb.dtype == xb.dtype
    assert jnp.allclose(
        yb.astype(jnp.float32), refb.astype(jnp.float32), rtol=1e-2, atol=1e-2
    ), "bf16 mismatch"

    print("KERNEL_OK")
</pallas_src>

<mosaic_0001>
module attributes {stable_mosaic.version = 11 : i64} {
  func.func @_leaky_relu_kernel(%arg0: i32, %arg1: memref<16x128xf32, #tpu.memory_space<vmem>>, %arg2: memref<16x128xf32, #tpu.memory_space<vmem>>) attributes {dimension_semantics = [#tpu.dimension_semantics<parallel>], iteration_bounds = array<i64: 1>, scalar_prefetch = 0 : i64, scratch_operands = 0 : i64, tpu.core_type = #tpu.core_type<tc>, window_params = [{transform_indices = @transform_0, window_bounds = array<i64: 16, 128>}, {transform_indices = @transform_1, window_bounds = array<i64: 16, 128>}]} {
    %c0 = arith.constant 0 : index
    %c0_0 = arith.constant 0 : index
    %0 = vector.load %arg1[%c0, %c0_0] : memref<16x128xf32, #tpu.memory_space<vmem>>, vector<16x128xf32>
    %cst = arith.constant 1.000000e-01 : f32
    %1 = vector.broadcast %cst : f32 to vector<16x128xf32>
    %2 = arith.mulf %0, %1 : vector<16x128xf32>
    %3 = arith.maximumf %2, %0 : vector<16x128xf32>
    %c0_1 = arith.constant 0 : index
    %c0_2 = arith.constant 0 : index
    %4 = vector.load %arg2[%c0_1, %c0_2] : memref<16x128xf32, #tpu.memory_space<vmem>>, vector<16x128xf32>
    tpu.vector_store %arg2[%c0_1, %c0_2], %3 {strides = array<i32>} : memref<16x128xf32, #tpu.memory_space<vmem>>, vector<16x128xf32>,
    return
  }
  func.func @transform_0(%arg0: i32) -> (i32, i32) {
    %c0_i32 = arith.constant 0 : i32
    %c0_i32_0 = arith.constant 0 : i32
    return %arg0, %c0_i32 : i32, i32
  }
  func.func @transform_1(%arg0: i32) -> (i32, i32) {
    %c0_i32 = arith.constant 0 : i32
    %c0_i32_0 = arith.constant 0 : i32
    return %arg0, %c0_i32 : i32, i32
  }
}

</mosaic_0001>

<llo_original>
// kernel: tpu_custom_call.1
$region0: #{tpu_custom_call.1}
  #allocation0 [shape = 'u32[]', space=smem, size = 0x4, offset = 0x4, fixed_abs, tag = 'smem constant byte address 0x4 - core index']
  #allocation1 [shape = 'u32[72,128]{1,0:T(1,128)}', space=vmem, size = 0x9000, scoped, tag = 'internal scratch']
  %s0 = inlined_call_operand.hbm [shape: f32[16,128], index: 0, kind: input, shape index: {}]
  %s1 = inlined_call_operand.hbm [shape: f32[16,128], index: 1, kind: output, shape index: {}]
  %s2 = sld [smem:[#allocation0]]
  $region18: #{tpu_custom_call.1} parent=0
    _
  %s4 = ssub.s32 1, %s2
  %s5 = scalar_select 0, %s4, %s2
  $region1: #{tpu_custom_call.1} parent=0
    #allocation2 [shape = 'u8[8192]{0}', space=vmem, size = 0x2000, scoped, tag = 'input window, operand 0, single buffered']
    #allocation3 [shape = 's32[1]{0}', space=sflag, size = 0x4, scoped, tag = 'scoped memory for tpu_custom_call.1']
    #allocation4 [shape = 's32[1]{0}', space=sflag, size = 0x4, scoped, tag = 'scoped memory for tpu_custom_call.1']
    #allocation5 [shape = 'u8[8192]{0}', space=vmem, size = 0x2000, scoped, tag = 'output window, operand 0, single buffered']
    %6 = vsyncpa [#allocation3], 0
    %7 = vsyncpa [#allocation4], 0
    // Predicated region
    $region2: #{tpu_custom_call.1} parent=1 // pred_check
      _
    $region3: #{tpu_custom_call.1} parent=1 // pred_check_branch
      %9 = sbr.rel (0) target = $region5
    $region4: #{tpu_custom_call.1} parent=1 // pred_region
      %11 = vsyncadd [#allocation3], 0
      %s12 = sshll.u32 %s0, 4
      %s13 = int_to_ptr.hbm [resolvable:$true] %s12
      %s14 = sshll.u32 [#allocation2], 4
      %s15 = int_to_ptr.vmem [resolvable:$true] %s14
      %20 = dma.hbm_to_vmem [thread:$0]  %s13, 256, %s15, [#allocation3], 128, 128, 8
    $region5: #{tpu_custom_call.1} parent=1 // pred_fallthru
      _
    // Predicated region
    $region6: #{tpu_custom_call.1} parent=1 // pred_check
      _
    $region7: #{tpu_custom_call.1} parent=1 // pred_check_branch
      %22 = sbr.rel (0) target = $region9
    $region8: #{tpu_custom_call.1} parent=1 // pred_region
      %24 = dma.done [#allocation3], 256
    $region9: #{tpu_custom_call.1} parent=1 // pred_fallthru
      _
    %v25 = vld [vmem:[#allocation2] sm:$0xff]
    %v26 = vld [vmem:[#allocation2 + $0x8] sm:$0xff]
    %v27 = vmul.f32 %v25, 0.1
    %v28 = vmul.f32 %v26, 0.1
    %v29 = vmax.f32 %v27, %v25
    %v30 = vmax.f32 %v28, %v26
    %31 = vst [vmem:[#allocation5] sm:$0xff] %v29
    %32 = vst [vmem:[#allocation5 + $0x8] sm:$0xff] %v30
    // Predicated region
    $region10: #{tpu_custom_call.1} parent=1 // pred_check
      _
    $region11: #{tpu_custom_call.1} parent=1 // pred_check_branch
      %34 = sbr.rel (0) target = $region13
    $region12: #{tpu_custom_call.1} parent=1 // pred_region
      %36 = vsyncadd [#allocation4], 0
      %s37 = sshll.u32 [#allocation5], 4
      %s38 = int_to_ptr.vmem [resolvable:$true] %s37
      %s39 = sshll.u32 %s1, 4
      %s40 = int_to_ptr.hbm [resolvable:$true] %s39
      %45 = dma.vmem_to_hbm [thread:$0]  %s38, 256, %s40, [#allocation4], 128, 128, 8
    $region13: #{tpu_custom_call.1} parent=1 // pred_fallthru
      _
    // Predicated region
    $region14: #{tpu_custom_call.1} parent=1 // pred_check
      _
    $region15: #{tpu_custom_call.1} parent=1 // pred_check_branch
      %47 = sbr.rel (0) target = $region17
    $region16: #{tpu_custom_call.1} parent=1 // pred_region
      %49 = dma.done [#allocation4], 256
    $region17: #{tpu_custom_call.1} parent=1 // pred_fallthru
      _
    %50 = vsyncpa [#allocation3], 1
    %51 = vsyncpa [#allocation4], 1

</llo_original>
